<compile_context>
chip_gen: v6e
topology: v6e:2x2x1
jax: 0.10.0
libtpu: 0.0.40
codegen_flags: <defaults>
</compile_context>

<pallas_src>
import jax
import jax.numpy as jnp
from jax.experimental import pallas as pl
from jax.experimental.pallas import tpu as pltpu


# ----------------------------------------------------------------------------
# Helpers
# ----------------------------------------------------------------------------
def _round_up(x: int, m: int) -> int:
    return ((x + m - 1) // m) * m


def _pad2d(x, rows, cols):
    r, c = x.shape
    return jnp.pad(x, ((0, rows - r), (0, cols - c)))


def _pick_out_tile(npad: int, candidates=(512, 384, 256, 128)) -> int:
    # Prefer the largest divisor that still yields >= 2 output blocks (so the
    # pair grid has extent for sharding / pipelining); else largest divisor.
    for t in candidates:
        if npad % t == 0 and npad // t >= 2:
            return t
    for t in candidates:
        if npad % t == 0:
            return t
    return 128


def _pick_k_tile(kpad: int, candidates=(512, 384, 256, 128)) -> int:
    for t in candidates:
        if kpad % t == 0:
            return t
    return 128


# ----------------------------------------------------------------------------
# Kernel:  out[pair p] = sum_k  lhs_T[i_p, k] @ rhs[k, j_p]      (f32 acc)
# One MXU matmul per k-step; accumulation directly in the f32 output block.
# ----------------------------------------------------------------------------
def _lmi_kernel(ii_ref, jj_ref, lhs_ref, rhs_ref, out_ref):
    del ii_ref, jj_ref  # only used by the index maps

    @pl.when(pl.program_id(1) == 0)
    def _init():
        out_ref[...] = jnp.zeros_like(out_ref)

    out_ref[...] += jnp.dot(lhs_ref[...], rhs_ref[...],
                            preferred_element_type=jnp.float32)


def neg_lmi_schur(lhs_T, rhs, *, tm, tn, tk):
    """Upper-triangular tiles of the symmetric Q = lhs_T @ rhs.

    lhs_T: (Npad, Kpad), rhs: (Kpad, Npad), both pre-scaled (and optionally
    pre-cast to bf16).  Returns (Npad, Npad) f32; only tiles with
    block_row <= block_col are valid (mirror in the wrapper).
    """
    Npad, Kpad = lhs_T.shape
    assert rhs.shape == (Kpad, Npad)
    assert tm == tn and Npad % tm == 0 and Kpad % tk == 0

    G = Npad // tm
    pairs = [(i, j) for i in range(G) for j in range(i, G)]
    ii = jnp.asarray([p[0] for p in pairs], dtype=jnp.int32)
    jj = jnp.asarray([p[1] for p in pairs], dtype=jnp.int32)
    n_pairs = len(pairs)
    grid = (n_pairs, Kpad // tk)

    isz = jnp.dtype(lhs_T.dtype).itemsize
    flops = 2 * n_pairs * tm * tn * Kpad
    bytes_accessed = (n_pairs * Kpad * (tm + tn) * isz
                      + n_pairs * tm * tn * 4)
    vmem_bytes = 2 * (tm * tk + tk * tn) * isz + 2 * tm * tn * 4
    vmem_limit = int(min(max(2 * vmem_bytes, 32 * 1024 * 1024),
                         48 * 1024 * 1024))   # headroom, safe on v7x 64 MiB

    return pl.pallas_call(
        _lmi_kernel,
        out_shape=jax.ShapeDtypeStruct((Npad, Npad), jnp.float32),
        grid_spec=pltpu.PrefetchScalarGridSpec(
            num_scalar_prefetch=2,
            grid=grid,
            in_specs=[
                pl.BlockSpec((tm, tk), lambda p, k, ii, jj: (ii[p], k)),
                pl.BlockSpec((tk, tn), lambda p, k, ii, jj: (k, jj[p])),
            ],
            out_specs=pl.BlockSpec((tm, tn), lambda p, k, ii, jj: (ii[p], jj[p])),
        ),
        compiler_params=pltpu.CompilerParams(
            # Reduction axis last.  The pair axis has a data-dependent output
            # index map, so it is conservatively marked "arbitrary".
            # TODO(synk): mark the pair axis "parallel" for v7x megacore once
            # validated with data-dependent output index maps.
            dimension_semantics=("arbitrary", "arbitrary"),
            vmem_limit_bytes=vmem_limit,
        ),
        cost_estimate=pl.CostEstimate(
            flops=flops, transcendentals=0, bytes_accessed=bytes_accessed),
    )(ii, jj, lhs_T, rhs)


# ----------------------------------------------------------------------------
# Forward pass (block-matrix glue in plain JAX, quadratic form in Pallas).
# ----------------------------------------------------------------------------
def lipschitz_forward(T_param, weights, dims, beta, L, *,
                      stream_dtype=jnp.float32):
    """weights[i] has shape (dims[i+1], dims[i]); T_param is (nT, nT)."""
    dims = tuple(int(d) for d in dims)
    nT = sum(dims[1:-1])
    N = sum(dims)

    # T = diag(diag(T_param)); only its diagonal feeds the quadratic form.
    t_diag = jnp.diag(T_param).astype(jnp.float32)           # (nT,)
    T = jnp.diag(t_diag)                                      # (nT, nT)

    # A = [block_diag(W_0..W_{l-2}) | 0],  B = [0 | I]  (both nT x sum(dims[:-1]))
    W = jax.scipy.linalg.block_diag(*[w.astype(jnp.float32) for w in weights[:-1]])
    A = jnp.hstack([W, jnp.zeros((nT, dims[-2]), jnp.float32)])
    B = jnp.hstack([jnp.zeros((nT, dims[0]), jnp.float32),
                    jnp.eye(nT, dtype=jnp.float32)])

    # Fold Ft (and the final negation) into one-off row scalings here:
    #   -LMI = [A; B]^T @ [(-beta t).B ; (-beta t).A + (2 t).B]
    t = t_diag[:, None]
    Bs = (-beta) * t * B
    As2 = (-beta) * t * A + 2.0 * t * B
    lhs = jnp.concatenate([A, B], axis=0)        # (2 nT, N - dims[-1])
    rhs = jnp.concatenate([Bs, As2], axis=0)     # (2 nT, N - dims[-1])

    # Lane-dense padding (also subsumes the block_diag(LMI, 0) Schur padding);
    # divisor-constrained tiles so the padding waste stays < 128 per axis.
    Npad = _round_up(N, 128)
    Kpad = _round_up(2 * nT, 128)
    tm = tn = _pick_out_tile(Npad)
    tk = _pick_k_tile(Kpad)

    lhs_T = _pad2d(lhs.T, Npad, Kpad).astype(stream_dtype)   # (Npad, Kpad)
    rhs_p = _pad2d(rhs, Kpad, Npad).astype(stream_dtype)     # (Kpad, Npad)

    # Only upper-triangular (tile-level) blocks of Q = -LMI_schur are computed.
    Q = neg_lmi_schur(lhs_T, rhs_p, tm=tm, tn=tn, tk=tk)

    # Mirror the symmetric result from the computed upper-triangular tiles.
    blk = jnp.arange(Npad, dtype=jnp.int32) // tm
    upper = blk[:, None] <= blk[None, :]
    Qfull = jnp.where(upper, Q, Q.T)

    # part2 = block_diag(-L^2 I, 0_inter, [[0, Wl^T],[Wl, -I]]), subtracted in
    # one fused XLA elementwise pass (not streamed through the kernel).
    lip = L ** 2
    Lmat = -lip * jnp.eye(dims[0], dtype=jnp.float32)
    dim_inter = sum(dims[1:-2])
    inter = jnp.zeros((dim_inter, dim_inter), jnp.float32)
    Wl = weights[-1].astype(jnp.float32)
    bf = jnp.block([[jnp.zeros((dims[-2], dims[-2]), jnp.float32), Wl.T],
                    [Wl, -jnp.eye(dims[-1], dtype=jnp.float32)]])
    part2 = jax.scipy.linalg.block_diag(Lmat, inter, bf)      # (N, N)

    negM = Qfull[:N, :N] - part2
    return negM, T


# ----------------------------------------------------------------------------
# Pure-JAX reference (mirrors the PyTorch forward literally) for validation.
# ----------------------------------------------------------------------------
def reference_forward(T_param, weights, dims, beta, L):
    dims = tuple(int(d) for d in dims)
    nT = sum(dims[1:-1])
    T = jnp.diag(jnp.diag(T_param))
    zero = jnp.zeros((nT, nT), jnp.float32)
    Ft = jnp.block([[zero, beta * T], [beta * T, -2.0 * T]])
    W = jax.scipy.linalg.block_diag(*weights[:-1])
    A = jnp.hstack([W, jnp.zeros((W.shape[0], dims[-2]), jnp.float32)])
    B = jnp.hstack([jnp.zeros((nT, dims[0]), jnp.float32),
                    jnp.eye(nT, dtype=jnp.float32)])
    AB = jnp.concatenate([A, B], axis=0)
    LMI = AB.T @ Ft @ AB
    LMI_schur = jax.scipy.linalg.block_diag(
        LMI, jnp.zeros((dims[-1], dims[-1]), jnp.float32))
    lip = L ** 2
    Lmat = -lip * jnp.eye(dims[0], dtype=jnp.float32)
    dim_inter = sum(dims[1:-2])
    inter = jnp.zeros((dim_inter, dim_inter), jnp.float32)
    Wl = weights[-1]
    bf = jnp.block([[jnp.zeros((dims[-2], dims[-2]), jnp.float32), Wl.T],
                    [Wl, -jnp.eye(dims[-1], dtype=jnp.float32)]])
    part2 = jax.scipy.linalg.block_diag(Lmat, inter, bf)
    M = LMI_schur + part2
    return -M, T


if __name__ == "__main__":
    beta = 0.5
    L_presc = 100.0   # prescribed Lipschitz constant (synthetic; no SDP solve)
    # TODO(synk): solve_lmi() (the cvxpy/MOSEK SDP in __init__) has no Pallas
    # equivalent; T is initialized randomly instead of from the SDP solution.

    def make_problem(dims, key):
        keys = jax.random.split(key, len(dims))
        weights = [
            jax.random.normal(keys[i], (dims[i + 1], dims[i]),
                              dtype=jnp.float32) * 0.1
            for i in range(len(dims) - 1)
        ]
        nT = sum(dims[1:-1])
        T_param = (jax.random.normal(keys[-1], (nT, nT), dtype=jnp.float32)
                   + jnp.eye(nT, dtype=jnp.float32))
        return weights, T_param

    # ---- case 1: toy MLP dims = (8, 16, 16, 8): f32 exact + bf16 fast path ----
    dims = (8, 16, 16, 8)
    weights, T_param = make_problem(dims, jax.random.PRNGKey(0))
    negM_ref, T_ref = reference_forward(T_param, weights, dims, beta, L_presc)

    negM, T = lipschitz_forward(T_param, weights, dims, beta, L_presc,
                                stream_dtype=jnp.float32)
    negM = jax.block_until_ready(negM)
    T = jax.block_until_ready(T)
    assert negM.shape == (sum(dims), sum(dims))
    assert T.shape == (sum(dims[1:-1]), sum(dims[1:-1]))
    assert jnp.allclose(T, T_ref, rtol=1e-5, atol=1e-5)
    assert jnp.allclose(negM, negM_ref, rtol=1e-4, atol=1e-3)

    negM_bf16, _ = lipschitz_forward(T_param, weights, dims, beta, L_presc,
                                     stream_dtype=jnp.bfloat16)
    negM_bf16 = jax.block_until_ready(negM_bf16)
    assert jnp.allclose(negM_bf16, negM_ref, rtol=3e-2, atol=1e-1)

    # ---- case 2: larger net -> multi-tile pair grid + symmetric mirror ----
    dims2 = (64, 96, 96, 64)
    weights2, T_param2 = make_problem(dims2, jax.random.PRNGKey(1))
    negM2_ref, _ = reference_forward(T_param2, weights2, dims2, beta, L_presc)
    negM2, _ = lipschitz_forward(T_param2, weights2, dims2, beta, L_presc,
                                 stream_dtype=jnp.float32)
    negM2 = jax.block_until_ready(negM2)
    assert negM2.shape == (sum(dims2), sum(dims2))
    assert jnp.allclose(negM2, negM2_ref, rtol=1e-4, atol=1e-3)

    print("KERNEL_OK")
</pallas_src>

<mosaic_0001>
module attributes {stable_mosaic.version = 11 : i64} {
  func.func @_lmi_kernel(%arg0: i32, %arg1: i32, %arg2: memref<1xi32, #tpu.memory_space<smem>>, %arg3: memref<1xi32, #tpu.memory_space<smem>>, %arg4: memref<128x128xf32, #tpu.memory_space<vmem>>, %arg5: memref<128x128xf32, #tpu.memory_space<vmem>>, %arg6: memref<128x128xf32, #tpu.memory_space<vmem>>) attributes {dimension_semantics = [#tpu.dimension_semantics<arbitrary>, #tpu.dimension_semantics<arbitrary>], iteration_bounds = array<i64: 1, 1>, scalar_prefetch = 2 : i64, scratch_operands = 0 : i64, tpu.core_type = #tpu.core_type<tc>, window_params = [{transform_indices = @transform_0, window_bounds = array<i64: 128, 128>}, {transform_indices = @transform_1, window_bounds = array<i64: 128, 128>}, {transform_indices = @transform_2, window_bounds = array<i64: 128, 128>}]} {
    %c0_i32 = arith.constant 0 : i32
    %0 = arith.cmpi eq, %arg1, %c0_i32 : i32
    %1 = arith.extui %0 : i1 to i32
    %c0_i32_0 = arith.constant 0 : i32
    %2 = arith.cmpi ne, %1, %c0_i32_0 : i32
    scf.if %2 {
      %cst_8 = arith.constant 0.000000e+00 : f32
      %9 = vector.broadcast %cst_8 : f32 to vector<128x128xf32>
      %c0_9 = arith.constant 0 : index
      %c0_10 = arith.constant 0 : index
      %10 = vector.load %arg6[%c0_9, %c0_10] : memref<128x128xf32, #tpu.memory_space<vmem>>, vector<128x128xf32>
      tpu.vector_store %arg6[%c0_9, %c0_10], %9 {strides = array<i32>} : memref<128x128xf32, #tpu.memory_space<vmem>>, vector<128x128xf32>,
    } else {
    }
    %c0 = arith.constant 0 : index
    %c0_1 = arith.constant 0 : index
    %3 = vector.load %arg6[%c0, %c0_1] : memref<128x128xf32, #tpu.memory_space<vmem>>, vector<128x128xf32>
    %c0_2 = arith.constant 0 : index
    %c0_3 = arith.constant 0 : index
    %4 = vector.load %arg4[%c0_2, %c0_3] : memref<128x128xf32, #tpu.memory_space<vmem>>, vector<128x128xf32>
    %c0_4 = arith.constant 0 : index
    %c0_5 = arith.constant 0 : index
    %5 = vector.load %arg5[%c0_4, %c0_5] : memref<128x128xf32, #tpu.memory_space<vmem>>, vector<128x128xf32>
    %cst = arith.constant dense<0.000000e+00> : vector<128x128xf32>
    %6 = tpu.matmul %4, %5, %cst {dimension_numbers = #tpu.dot_dimension_numbers<[1], [0], [0], [1], [0, 0, 1, 1], [], []>} : vector<128x128xf32>, vector<128x128xf32>, vector<128x128xf32> -> vector<128x128xf32>
    %7 = arith.addf %3, %6 : vector<128x128xf32>
    %c0_6 = arith.constant 0 : index
    %c0_7 = arith.constant 0 : index
    %8 = vector.load %arg6[%c0_6, %c0_7] : memref<128x128xf32, #tpu.memory_space<vmem>>, vector<128x128xf32>
    tpu.vector_store %arg6[%c0_6, %c0_7], %7 {strides = array<i32>} : memref<128x128xf32, #tpu.memory_space<vmem>>, vector<128x128xf32>,
    return
  }
  func.func @transform_0(%arg0: i32, %arg1: i32, %arg2: memref<1xi32, #tpu.memory_space<smem>>, %arg3: memref<1xi32, #tpu.memory_space<smem>>) -> (i32, i32) {
    %0 = arith.index_cast %arg0 : i32 to index
    %1 = memref.load %arg2[%0] : memref<1xi32, #tpu.memory_space<smem>>
    %c0_i32 = arith.constant 0 : i32
    return %1, %arg1 : i32, i32
  }
  func.func @transform_1(%arg0: i32, %arg1: i32, %arg2: memref<1xi32, #tpu.memory_space<smem>>, %arg3: memref<1xi32, #tpu.memory_space<smem>>) -> (i32, i32) {
    %0 = arith.index_cast %arg0 : i32 to index
    %1 = memref.load %arg3[%0] : memref<1xi32, #tpu.memory_space<smem>>
    %c0_i32 = arith.constant 0 : i32
    return %arg1, %1 : i32, i32
  }
  func.func @transform_2(%arg0: i32, %arg1: i32, %arg2: memref<1xi32, #tpu.memory_space<smem>>, %arg3: memref<1xi32, #tpu.memory_space<smem>>) -> (i32, i32) {
    %0 = arith.index_cast %arg0 : i32 to index
    %1 = memref.load %arg2[%0] : memref<1xi32, #tpu.memory_space<smem>>
    %2 = arith.index_cast %arg0 : i32 to index
    %3 = memref.load %arg3[%2] : memref<1xi32, #tpu.memory_space<smem>>
    %c0_i32 = arith.constant 0 : i32
    return %1, %3 : i32, i32
  }
}

</mosaic_0001>

<llo_original>
// kernel: tpu_custom_call.1
$region0: #{tpu_custom_call.1}
  #allocation0 [shape = 'u32[]', space=smem, size = 0x4, offset = 0x4, fixed_abs, tag = 'smem constant byte address 0x4 - core index']
  #allocation1 [shape = 'u32[144,128]{1,0:T(1,128)}', space=vmem, size = 0x12000, scoped, tag = 'internal scratch']
  #allocation2 [shape = 's32[1]{0}', space=sflag, size = 0x4, scoped, tag = 'scoped memory for tpu_custom_call.1']
  #allocation3 [shape = 's32[1]{0:T(128)S(6)}', space=smem, size = 0x200, scoped, tag = 'prefetched SMEM operand 0']
  #allocation4 [shape = 's32[1]{0:T(128)S(6)}', space=smem, size = 0x200, scoped, tag = 'prefetched SMEM operand 1']
  %s0 = inlined_call_operand.<no memory space> [shape: s32[1], index: 0, kind: input, shape index: {}]
  %s1 = inlined_call_operand.<no memory space> [shape: s32[1], index: 1, kind: input, shape index: {}]
  %s2 = inlined_call_operand.hbm [shape: f32[128,128], index: 2, kind: input, shape index: {}]
  %s3 = inlined_call_operand.hbm [shape: f32[128,128], index: 3, kind: input, shape index: {}]
  %s4 = inlined_call_operand.hbm [shape: f32[128,128], index: 4, kind: output, shape index: {}]
  %s5 = sld [smem:[#allocation0]]
  $region30: #{tpu_custom_call.1} parent=0
    _
  %s7 = ssub.s32 1, %s5
  %s8 = scalar_select 0, %s7, %s5
  %9 = sst [smem:[#allocation3]] %s0
  %10 = sst [smem:[#allocation4]] %s1
  $region1: #{tpu_custom_call.1} parent=0
    #allocation5 [shape = 'u8[65536]{0}', space=vmem, size = 0x10000, scoped, tag = 'input window, operand 2, single buffered']
    #allocation6 [shape = 's32[1]{0}', space=sflag, size = 0x4, scoped, tag = 'scoped memory for tpu_custom_call.1']
    #allocation7 [shape = 's32[1]{0}', space=sflag, size = 0x4, scoped, tag = 'scoped memory for tpu_custom_call.1']
    #allocation8 [shape = 'u8[65536]{0}', space=vmem, size = 0x10000, scoped, tag = 'input window, operand 3, single buffered']
    #allocation9 [shape = 's32[1]{0}', space=sflag, size = 0x4, scoped, tag = 'scoped memory for tpu_custom_call.1']
    #allocation10 [shape = 'u8[65536]{0}', space=vmem, size = 0x10000, scoped, tag = 'output window, operand 0, single buffered']
    %11 = vsyncpa [#allocation6], 0
    %12 = vsyncpa [#allocation9], 0
    %13 = vsyncpa [#allocation7], 0
    // Predicated region
    $region2: #{tpu_custom_call.1} parent=1 // pred_check
      _
    $region3: #{tpu_custom_call.1} parent=1 // pred_check_branch
      %15 = sbr.rel (0) target = $region5
    $region4: #{tpu_custom_call.1} parent=1 // pred_region
      %s16 = sld [smem:[#allocation3]]
      %s17 = smul.u32 16, %s16
      %s19 = ssub.s32 2048, 2048
      %20 = vsyncadd [#allocation6], %s19
      %s21 = smul.addr %s17, 128
      %s22 = scalar_lea.hbm %s2, %s21
      %s23 = sshll.u32 [#allocation5], 4
      %s24 = int_to_ptr.vmem [resolvable:$true] %s23
      %29 = dma.hbm_to_vmem [thread:$0]  %s22, 2048, %s24, [#allocation6], 128, 128, 8
    $region5: #{tpu_custom_call.1} parent=1 // pred_fallthru
      _
    // Predicated region
    $region6: #{tpu_custom_call.1} parent=1 // pred_check
      _
    $region7: #{tpu_custom_call.1} parent=1 // pred_check_branch
      %31 = sbr.rel (0) target = $region9
    $region8: #{tpu_custom_call.1} parent=1 // pred_region
      %s32 = sld [smem:[#allocation4]]
      %s34 = ssub.s32 2048, 2048
      %35 = vsyncadd [#allocation9], %s34
      %s36 = smul.addr %s32, 128
      %s37 = scalar_lea.hbm %s3, %s36
      %s38 = sshll.u32 [#allocation8], 4
      %s39 = int_to_ptr.vmem [resolvable:$true] %s38
      %44 = dma.hbm_to_vmem [thread:$0]  %s37, 2048, %s39, [#allocation9], 128, 128, 8
    $region9: #{tpu_custom_call.1} parent=1 // pred_fallthru
      _
    // Predicated region
    $region10: #{tpu_custom_call.1} parent=1 // pred_check
      _
    $region11: #{tpu_custom_call.1} parent=1 // pred_check_branch
      %46 = sbr.rel (0) target = $region13
    $region12: #{tpu_custom_call.1} parent=1 // pred_region
      %47 = dma.done [#allocation6], 2048
    $region13: #{tpu_custom_call.1} parent=1 // pred_fallthru
      _
    // Predicated region
    $region14: #{tpu_custom_call.1} parent=1 // pred_check
      _
    $region15: #{tpu_custom_call.1} parent=1 // pred_check_branch
      %49 = sbr.rel (0) target = $region17
    $region16: #{tpu_custom_call.1} parent=1 // pred_region
      %50 = dma.done [#allocation9], 2048
    $region17: #{tpu_custom_call.1} parent=1 // pred_fallthru
      _
    %s51 = sld [smem:[#allocation3]]
    %s52 = smul.u32 16, %s51
    %s53 = sld [smem:[#allocation4]]
    %s54 = sld [smem:[#allocation3]]
    %s55 = sld [smem:[#allocation4]]
    %s56 = smul.u32 16, %s54
    %p57 = scmp.eq.s32.totalorder 0, 0
    // Predicated region
    $region18: #{tpu_custom_call.1} parent=1 // pred_check
      %p58 = pneg %p57
    $region19: #{tpu_custom_call.1} parent=1 // pred_check_branch
      %60 = sbr.rel (%p58) target = $region21
    $region20: #{tpu_custom_call.1} parent=1 // pred_region
      %61 = vst [vmem:[#allocation10] sm:$0xff] 0.0
      %62 = vst [vmem:[#allocation10 + $0x8] sm:$0xff] 0.0
      %63 = vst [vmem:[#allocation10 + $0x10] sm:$0xff] 0.0
      %64 = vst [vmem:[#allocation10 + $0x18] sm:$0xff] 0.0
      %65 = vst [vmem:[#allocation10 + $0x20] sm:$0xff] 0.0
      %66 = vst [vmem:[#allocation10 + $0x28] sm:$0xff] 0.0
      %67 = vst [vmem:[#allocation10 + $0x30] sm:$0xff] 0.0
      %68 = vst [vmem:[#allocation10 + $0x38] sm:$0xff] 0.0
      %69 = vst [vmem:[#allocation10 + $0x40] sm:$0xff] 0.0
      %70 = vst [vmem:[#allocation10 + $0x48] sm:$0xff] 0.0
      %71 = vst [vmem:[#allocation10 + $0x50] sm:$0xff] 0.0
      %72 = vst [vmem:[#allocation10 + $0x58] sm:$0xff] 0.0
      %73 = vst [vmem:[#allocation10 + $0x60] sm:$0xff] 0.0
      %74 = vst [vmem:[#allocation10 + $0x68] sm:$0xff] 0.0
      %75 = vst [vmem:[#allocation10 + $0x70] sm:$0xff] 0.0
      %76 = vst [vmem:[#allocation10 + $0x78] sm:$0xff] 0.0
    $region21: #{tpu_custom_call.1} parent=1 // pred_fallthru
      _
    %v77 = vld [vmem:[#allocation10] sm:$0xff]
    %v78 = vld [vmem:[#allocation10 + $0x8] sm:$0xff]
    %v79 = vld [vmem:[#allocation10 + $0x10] sm:$0xff]
    %v80 = vld [vmem:[#allocation10 + $0x18] sm:$0xff]
    %v81 = vld [vmem:[#allocation10 + $0x20] sm:$0xff]
    %v82 = vld [vmem:[#allocation10 + $0x28] sm:$0xff]
    %v83 = vld [vmem:[#allocation10 + $0x30] sm:$0xff]
    %v84 = vld [vmem:[#allocation10 + $0x38] sm:$0xff]
    %v85 = vld [vmem:[#allocation10 + $0x40] sm:$0xff]
    %v86 = vld [vmem:[#allocation10 + $0x48] sm:$0xff]
    %v87 = vld [vmem:[#allocation10 + $0x50] sm:$0xff]
    %v88 = vld [vmem:[#allocation10 + $0x58] sm:$0xff]
    %v89 = vld [vmem:[#allocation10 + $0x60] sm:$0xff]
    %v90 = vld [vmem:[#allocation10 + $0x68] sm:$0xff]
    %v91 = vld [vmem:[#allocation10 + $0x70] sm:$0xff]
    %v92 = vld [vmem:[#allocation10 + $0x78] sm:$0xff]
    %v93 = vld [vmem:[#allocation5] sm:$0xff]
    %v94 = vld [vmem:[#allocation5 + $0x8] sm:$0xff]
    %v95 = vld [vmem:[#allocation5 + $0x10] sm:$0xff]
    %v96 = vld [vmem:[#allocation5 + $0x18] sm:$0xff]
    %v97 = vld [vmem:[#allocation5 + $0x20] sm:$0xff]
    %v98 = vld [vmem:[#allocation5 + $0x28] sm:$0xff]
    %v99 = vld [vmem:[#allocation5 + $0x30] sm:$0xff]
    %v100 = vld [vmem:[#allocation5 + $0x38] sm:$0xff]
    %v101 = vld [vmem:[#allocation5 + $0x40] sm:$0xff]
    %v102 = vld [vmem:[#allocation5 + $0x48] sm:$0xff]
    %v103 = vld [vmem:[#allocation5 + $0x50] sm:$0xff]
    %v104 = vld [vmem:[#allocation5 + $0x58] sm:$0xff]
    %v105 = vld [vmem:[#allocation5 + $0x60] sm:$0xff]
    %v106 = vld [vmem:[#allocation5 + $0x68] sm:$0xff]
    %v107 = vld [vmem:[#allocation5 + $0x70] sm:$0xff]
    %v108 = vld [vmem:[#allocation5 + $0x78] sm:$0xff]
    %v109 = vld [vmem:[#allocation8] sm:$0xff]
    %v110 = vld [vmem:[#allocation8 + $0x8] sm:$0xff]
    %v111 = vld [vmem:[#allocation8 + $0x10] sm:$0xff]
    %v112 = vld [vmem:[#allocation8 + $0x18] sm:$0xff]
    %v113 = vld [vmem:[#allocation8 + $0x20] sm:$0xff]
    %v114 = vld [vmem:[#allocation8 + $0x28] sm:$0xff]
    %v115 = vld [vmem:[#allocation8 + $0x30] sm:$0xff]
    %v116 = vld [vmem:[#allocation8 + $0x38] sm:$0xff]
    %v117 = vld [vmem:[#allocation8 + $0x40] sm:$0xff]
    %v118 = vld [vmem:[#allocation8 + $0x48] sm:$0xff]
    %v119 = vld [vmem:[#allocation8 + $0x50] sm:$0xff]
    %v120 = vld [vmem:[#allocation8 + $0x58] sm:$0xff]
    %v121 = vld [vmem:[#allocation8 + $0x60] sm:$0xff]
    %v122 = vld [vmem:[#allocation8 + $0x68] sm:$0xff]
    %v123 = vld [vmem:[#allocation8 + $0x70] sm:$0xff]
    %v124 = vld [vmem:[#allocation8 + $0x78] sm:$0xff]
    %125 = vmatprep.subr.mxu0 0.0
    %126 = vmatpush1.msra.mxu0 %v124
    %127 = vmatprep.subr.mxu0 0.0
    %128 = vmatpush1.msra.mxu0 %v123
    %129 = vmatprep.subr.mxu0 0.0
    %130 = vmatpush1.msra.mxu0 %v122
    %131 = vmatprep.subr.mxu0 0.0
    %132 = vmatpush1.msra.mxu0 %v121
    %133 = vmatprep.subr.mxu0 0.0
    %134 = vmatpush1.msra.mxu0 %v120
    %135 = vmatprep.subr.mxu0 0.0
    %136 = vmatpush1.msra.mxu0 %v119
    %137 = vmatprep.subr.mxu0 0.0
    %138 = vmatpush1.msra.mxu0 %v118
    %139 = vmatprep.subr.mxu0 0.0
    %140 = vmatpush1.msra.mxu0 %v117
    %141 = vmatprep.subr.mxu0 0.0
    %142 = vmatpush1.msra.mxu0 %v116
    %143 = vmatprep.subr.mxu0 0.0
    %144 = vmatpush1.msra.mxu0 %v115
    %145 = vmatprep.subr.mxu0 0.0
    %146 = vmatpush1.msra.mxu0 %v114
    %147 = vmatprep.subr.mxu0 0.0
    %148 = vmatpush1.msra.mxu0 %v113
    %149 = vmatprep.subr.mxu0 0.0
    %150 = vmatpush1.msra.mxu0 %v112
    %151 = vmatprep.subr.mxu0 0.0
    %152 = vmatpush1.msra.mxu0 %v111
    %153 = vmatprep.subr.mxu0 0.0
    %154 = vmatpush1.msra.mxu0 %v110
    %155 = vmatprep.subr.mxu0 0.0
    %156 = vmatpush1.msra.mxu0 %v109
    %157 = vmatprep.subr.mxu0 0.0
    %158 = vmatpush2.msra.mxu0 0.0
    %159 = vmatprep.subr.mxu0 0.0
    %160 = vmatpush2.msra.mxu0 0.0
    %161 = vmatprep.subr.mxu0 0.0
    %162 = vmatpush2.msra.mxu0 0.0
    %163 = vmatprep.subr.mxu0 0.0
    %164 = vmatpush2.msra.mxu0 0.0
    %165 = vmatprep.subr.mxu0 0.0
    %166 = vmatpush2.msra.mxu0 0.0
    %167 = vmatprep.subr.mxu0 0.0
    %168 = vmatpush2.msra.mxu0 0.0
    %169 = vmatprep.subr.mxu0 0.0
    %170 = vmatpush2.msra.mxu0 0.0
    %171 = vmatprep.subr.mxu0 0.0
    %172 = vmatpush2.msra.mxu0 0.0
    %173 = vmatprep.subr.mxu0 0.0
    %174 = vmatpush2.msra.mxu0 0.0
    %175 = vmatprep.subr.mxu0 0.0
    %176 = vmatpush2.msra.mxu0 0.0
    %177 = vmatprep.subr.mxu0 0.0
    %178 = vmatpush2.msra.mxu0 0.0
    %179 = vmatprep.subr.mxu0 0.0
    %180 = vmatpush2.msra.mxu0 0.0
    %181 = vmatprep.subr.mxu0 0.0
    %182 = vmatpush2.msra.mxu0 0.0
    %183 = vmatprep.subr.mxu0 0.0
    %184 = vmatpush2.msra.mxu0 0.0
    %185 = vmatprep.subr.mxu0 0.0
    %186 = vmatpush2.msra.mxu0 0.0
    %187 = vmatprep.subr.mxu0 0.0
    %188 = vmatpush2.msra.mxu0 0.0
    %189 = vmatprep.mubr.f32.mxu0 0.0
    %190 = vmatmul.mubr.f32.gmra.mxu0 %v93
    %v191 = vpop.f32.mrf.mxu0
    %v192 = vadd.f32 0.0, %v191
    %v193 = vpop.f32.mrf.mxu0
    %194 = vmatprep.mubr.f32.mxu0 0.0
    %195 = vmatmul.mubr.f32.gmra.mxu0 %v94
    %v196 = vpop.f32.mrf.mxu0
    %v197 = vadd.f32 0.0, %v196
    %v198 = vpop.f32.mrf.mxu0
    %199 = vmatprep.mubr.f32.mxu0 0.0
    %200 = vmatmul.mubr.f32.gmra.mxu0 %v95
    %v201 = vpop.f32.mrf.mxu0
    %v202 = vadd.f32 0.0, %v201
    %v203 = vpop.f32.mrf.mxu0
    %204 = vmatprep.mubr.f32.mxu0 0.0
    %205 = vmatmul.mubr.f32.gmra.mxu0 %v96
    %v206 = vpop.f32.mrf.mxu0
    %v207 = vadd.f32 0.0, %v206
    %v208 = vpop.f32.mrf.mxu0
    %209 = vmatprep.mubr.f32.mxu0 0.0
    %210 = vmatmul.mubr.f32.gmra.mxu0 %v97
    %v211 = vpop.f32.mrf.mxu0
    %v212 = vadd.f32 0.0, %v211
    %v213 = vpop.f32.mrf.mxu0
    %214 = vmatprep.mubr.f32.mxu0 0.0
    %215 = vmatmul.mubr.f32.gmra.mxu0 %v98
    %v216 = vpop.f32.mrf.mxu0
    %v217 = vadd.f32 0.0, %v216
    %v218 = vpop.f32.mrf.mxu0
    %219 = vmatprep.mubr.f32.mxu0 0.0
    %220 = vmatmul.mubr.f32.gmra.mxu0 %v99
    %v221 = vpop.f32.mrf.mxu0
    %v222 = vadd.f32 0.0, %v221
    %v223 = vpop.f32.mrf.mxu0
    %224 = vmatprep.mubr.f32.mxu0 0.0
    %225 = vmatmul.mubr.f32.gmra.mxu0 %v100
    %v226 = vpop.f32.mrf.mxu0
    %v227 = vadd.f32 0.0, %v226
    %v228 = vpop.f32.mrf.mxu0
    %229 = vmatprep.mubr.f32.mxu0 0.0
    %230 = vmatmul.mubr.f32.gmra.mxu0 %v101
    %v231 = vpop.f32.mrf.mxu0
    %v232 = vadd.f32 0.0, %v231
    %v233 = vpop.f32.mrf.mxu0
    %234 = vmatprep.mubr.f32.mxu0 0.0
    %235 = vmatmul.mubr.f32.gmra.mxu0 %v102
    %v236 = vpop.f32.mrf.mxu0
    %v237 = vadd.f32 0.0, %v236
    %v238 = vpop.f32.mrf.mxu0
    %239 = vmatprep.mubr.f32.mxu0 0.0
    %240 = vmatmul.mubr.f32.gmra.mxu0 %v103
    %v241 = vpop.f32.mrf.mxu0
    %v242 = vadd.f32 0.0, %v241
    %v243 = vpop.f32.mrf.mxu0
    %244 = vmatprep.mubr.f32.mxu0 0.0
    %245 = vmatmul.mubr.f32.gmra.mxu0 %v104
    %v246 = vpop.f32.mrf.mxu0
    %v247 = vadd.f32 0.0, %v246
    %v248 = vpop.f32.mrf.mxu0
    %249 = vmatprep.mubr.f32.mxu0 0.0
    %250 = vmatmul.mubr.f32.gmra.mxu0 %v105
    %v251 = vpop.f32.mrf.mxu0
    %v252 = vadd.f32 0.0, %v251
    %v253 = vpop.f32.mrf.mxu0
    %254 = vmatprep.mubr.f32.mxu0 0.0
    %255 = vmatmul.mubr.f32.gmra.mxu0 %v106
    %v256 = vpop.f32.mrf.mxu0
    %v257 = vadd.f32 0.0, %v256
    %v258 = vpop.f32.mrf.mxu0
    %259 = vmatprep.mubr.f32.mxu0 0.0
    %260 = vmatmul.mubr.f32.gmra.mxu0 %v107
    %v261 = vpop.f32.mrf.mxu0
    %v262 = vadd.f32 0.0, %v261
    %v263 = vpop.f32.mrf.mxu0
    %264 = vmatprep.mubr.f32.mxu0 0.0
    %265 = vmatmul.mubr.f32.gmra.mxu0 %v108
    %v266 = vpop.f32.mrf.mxu0
    %v267 = vadd.f32 0.0, %v266
    %v268 = vpop.f32.mrf.mxu0
    %269 = vdwg.mxu0
    %v270 = vadd.f32 %v77, %v192
    %v271 = vadd.f32 %v78, %v197
    %v272 = vadd.f32 %v79, %v202
    %v273 = vadd.f32 %v80, %v207
    %v274 = vadd.f32 %v81, %v212
    %v275 = vadd.f32 %v82, %v217
    %v276 = vadd.f32 %v83, %v222
    %v277 = vadd.f32 %v84, %v227
    %v278 = vadd.f32 %v85, %v232
    %v279 = vadd.f32 %v86, %v237
    %v280 = vadd.f32 %v87, %v242
    %v281 = vadd.f32 %v88, %v247
    %v282 = vadd.f32 %v89, %v252
    %v283 = vadd.f32 %v90, %v257
    %v284 = vadd.f32 %v91, %v262
    %v285 = vadd.f32 %v92, %v267
    %286 = vst [vmem:[#allocation10] sm:$0xff] %v270
    %287 = vst [vmem:[#allocation10 + $0x8] sm:$0xff] %v271
    %288 = vst [vmem:[#allocation10 + $0x10] sm:$0xff] %v272
    %289 = vst [vmem:[#allocation10 + $0x18] sm:$0xff] %v273
    %290 = vst [vmem:[#allocation10 + $0x20] sm:$0xff] %v274
    %291 = vst [vmem:[#allocation10 + $0x28] sm:$0xff] %v275
    %292 = vst [vmem:[#allocation10 + $0x30] sm:$0xff] %v276
    %293 = vst [vmem:[#allocation10 + $0x38] sm:$0xff] %v277
    %294 = vst [vmem:[#allocation10 + $0x40] sm:$0xff] %v278
    %295 = vst [vmem:[#allocation10 + $0x48] sm:$0xff] %v279
    %296 = vst [vmem:[#allocation10 + $0x50] sm:$0xff] %v280
    %297 = vst [vmem:[#allocation10 + $0x58] sm:$0xff] %v281
    %298 = vst [vmem:[#allocation10 + $0x60] sm:$0xff] %v282
    %299 = vst [vmem:[#allocation10 + $0x68] sm:$0xff] %v283
    %300 = vst [vmem:[#allocation10 + $0x70] sm:$0xff] %v284
    %301 = vst [vmem:[#allocation10 + $0x78] sm:$0xff] %v285
    // Predicated region
    $region22: #{tpu_custom_call.1} parent=1 // pred_check
      _
    $region23: #{tpu_custom_call.1} parent=1 // pred_check_branch
      %303 = sbr.rel (0) target = $region25
    $region24: #{tpu_custom_call.1} parent=1 // pred_region
      %s304 = sld [smem:[#allocation3]]
      %s305 = sld [smem:[#allocation4]]
      %s306 = smul.u32 16, %s304
      %s308 = ssub.s32 2048, 2048
      %309 = vsyncadd [#allocation7], %s308
      %s310 = sadd.s32 %s305, %s306
      %s311 = smul.addr %s310, 128
      %s312 = scalar_lea.hbm %s4, %s311
      %s313 = sshll.u32 [#allocation10], 4
      %s314 = int_to_ptr.vmem [resolvable:$true] %s313
      %319 = dma.vmem_to_hbm [thread:$0]  %s314, 2048, %s312, [#allocation7], 128, 128, 8
    $region25: #{tpu_custom_call.1} parent=1 // pred_fallthru
      _
    // Predicated region
    $region26: #{tpu_custom_call.1} parent=1 // pred_check
      _
    $region27: #{tpu_custom_call.1} parent=1 // pred_check_branch
      %321 = sbr.rel (0) target = $region29
    $region28: #{tpu_custom_call.1} parent=1 // pred_region
      %322 = dma.done [#allocation7], 2048
    $region29: #{tpu_custom_call.1} parent=1 // pred_fallthru
      _
    %323 = vsyncpa [#allocation6], 1
    %324 = vsyncpa [#allocation9], 1
    %325 = vsyncpa [#allocation7], 1

</llo_original>
